<compile_context>
chip_gen: v5e
topology: v5e:2x2
jax: 0.10.0
libtpu: 0.0.40
codegen_flags: <defaults>
</compile_context>

<pallas_src>
import functools

import jax
import jax.numpy as jnp
from jax.experimental import pallas as pl
from jax.experimental.pallas import tpu as pltpu


def _cdiv(a, b):
    return -(-a // b)


def _round_up(x, m):
    return _cdiv(x, m) * m


def _chip_config():
    """Returns (mxu_dim, two_tensorcores, vmem_block_budget, vmem_limit_bytes)."""
    kind = ""
    try:
        dev = jax.devices()[0]
        if dev.platform == "tpu":
            kind = dev.device_kind.lower()
    except Exception:  # defensive: fall back to safe defaults
        pass
    if "v7" in kind:                       # 64 MiB VMEM / TC, 2 TCs, 256x256 MXU
        return 256, True, 20 << 20, 40 << 20
    if "v6" in kind:                       # 128 MiB VMEM, 1 TC, 256x256 MXU
        return 256, False, 56 << 20, 100 << 20
    if "v5" in kind:
        if "lite" in kind or "v5e" in kind:   # v5e: 128 MiB VMEM, 1 TC, 128x128 MXU
            return 128, False, 56 << 20, 100 << 20
        return 128, True, 56 << 20, 100 << 20  # v5p: megacore, 128 MiB VMEM
    if "v4" in kind:                       # megacore, 128 MiB VMEM
        return 128, True, 48 << 20, 96 << 20
    if "v2" in kind or "v3" in kind:       # small VMEM: stay conservative
        return 128, True, 8 << 20, None
    # Unknown / undetected chip: settings known to compile & run everywhere.
    return 256, True, 20 << 20, 48 << 20


def _cov_pool_kernel(f_ref, o_ref, acc_ref, sum_ref, *, n, g, inv_tm1, inv_ttm1):
    # f_ref:   (gpb, g*n, tk)    packed input tile (native dtype straight to the MXU)
    # o_ref:   (gpb, g, n, n)    f32 output block, written only in the finalize step
    # acc_ref: (gpb, g*n, g*n)   f32 packed Gram accumulator (resident across T axis)
    # sum_ref: (gpb, g*n, 1)     f32 running per-channel sums (column layout)
    k = pl.program_id(1)
    nk = pl.num_programs(1)

    @pl.when(k == 0)
    def _init():
        acc_ref[...] = jnp.zeros_like(acc_ref)
        sum_ref[...] = jnp.zeros_like(sum_ref)

    fg = f_ref[...]                                           # (gpb, P, tk)

    # Packed Gram accumulation: one (P, tk) x (tk, P) MXU matmul per group of g
    # batch elements (P = g*n ~ MXU width).  Operands stay in the input dtype,
    # accumulation is f32.
    acc_ref[...] += jnp.einsum(
        "gpt,gqt->gpq", fg, fg, preferred_element_type=jnp.float32)

    # Per-channel sums: lane (XLU) reduction with f32 accumulation.  No extra MXU
    # pass per step (a ones-matvec would cost as much MXU time as the Gram) and
    # no explicit full-tile f32 cast for f32 inputs.
    sum_ref[...] += jnp.sum(fg, axis=2, keepdims=True, dtype=jnp.float32)

    @pl.when(k == nk - 1)
    def _finalize():
        # Index masks shared by every diagonal block below.
        idx_p = jax.lax.broadcasted_iota(jnp.int32, (1, n, n), 1)
        idx_q = jax.lax.broadcasted_iota(jnp.int32, (1, n, n), 2)
        diag = idx_p == idx_q

        for j in range(g):                                    # g <= 64, static unroll
            sl = slice(j * n, (j + 1) * n)
            gram_j = acc_ref[:, sl, sl]                       # (gpb, n, n) diag block
            s_col = sum_ref[:, sl, :]                         # (gpb, n, 1)  s[p]
            # Row form of the sums via mask + sublane reduce (a tiny "transpose"
            # built only from broadcast/select/reduce).
            s_row = jnp.sum(jnp.where(diag, s_col, 0.0),
                            axis=1, keepdims=True)            # (gpb, 1, n)  s[q]
            cov = gram_j * inv_tm1 - (s_col * s_row) * inv_ttm1

            # add_id regularization: X += 1e-6 * trace(X) * I (bool diag mask,
            # no f32 identity temp, no extra n^2 multiply).
            tr = jnp.sum(jnp.where(diag, cov, 0.0), axis=(1, 2), keepdims=True)
            o_ref[:, j, :, :] = jnp.where(diag, cov + 1e-6 * tr, cov).astype(o_ref.dtype)


def cov_pool(f, reg_mode="add_id", *, block_b=None, block_t=None, pack=None):
    """f: (B, 1, n, T) -> (B, 1, n, n) covariance matrices (float32)."""
    if reg_mode != "add_id":
        # TODO(synk): 'adjust_eig' reg mode needs an eigendecomposition; no clean Pallas equivalent.
        raise NotImplementedError("only reg_mode='add_id' is implemented")

    f = jnp.squeeze(f, axis=1)                                # (B, n, T)
    B, n, T = f.shape
    itemsize = jnp.dtype(f.dtype).itemsize
    mxu_dim, two_tc, vmem_budget, vmem_limit = _chip_config()

    # ---- MXU packing width: g batch elements share one (g*n, g*n) packed Gram ----
    if pack is not None:
        g = max(1, int(pack))
    elif n % 8 == 0:
        g = max(1, min(mxu_dim // n, B, 64))
    else:
        # Keep sublane-unaligned channel counts unpacked so every diagonal-block
        # slice in the finalize stays sublane-aligned.
        g = 1
    P = g * n

    # ---- T tiling (reduction axis; tk == T or a multiple of 128) ----
    TK_MAX = 2048
    if block_t is not None:
        tk = min(int(block_t), T)
    elif T <= TK_MAX:
        tk = T
    else:
        nk0 = _cdiv(T, TK_MAX)
        tk = 128 * _cdiv(_cdiv(T, nk0), 128)
    if tk != T and tk % 128 != 0:
        raise ValueError("T tile must be a multiple of 128 (or the full T)")
    nk = _cdiv(T, tk)
    T_pad = nk * tk

    # ---- group (batch) tiling from the per-generation VMEM budget ----
    G = _cdiv(B, g)                                           # number of packed groups
    per_group = (2 * _round_up(P, 8) * _round_up(tk, 128) * itemsize   # input (x2 buffers)
                 + _round_up(P, 8) * _round_up(P, 128) * 4             # packed Gram acc
                 + _round_up(P, 8) * 128 * 4                           # (P, 1) sums (lane-padded)
                 + 2 * g * _round_up(n, 8) * _round_up(n, 128) * 4)    # output block (x2)
    if block_b is not None:
        gpb = max(1, min(_cdiv(int(block_b), g), G))
    else:
        gpb = max(1, min(G, vmem_budget // max(per_group, 1), 256))
        if two_tc and G >= 2:
            # >= 2 batch-grid steps so both TensorCores get work (v7x / megacore only).
            gpb = max(1, min(gpb, _cdiv(G, 2)))
    gb = _cdiv(G, gpb)
    G_pad = gb * gpb
    B_pad = G_pad * g

    # Zero padding is benign: zero columns / zero batch rows contribute nothing to
    # the Gram or the sums, and padded batch rows are dropped after the call.
    if B_pad != B or T_pad != T:
        f = jnp.pad(f, ((0, B_pad - B), (0, 0), (0, T_pad - T)))
    fg = f.reshape(G_pad, P, T_pad)                           # contiguous (free) reshape

    # Unbiased-covariance scale factors: precomputed reciprocals so the epilogue
    # multiplies instead of dividing.  T == 1 reproduces PyTorch's inf/nan result.
    inv_tm1 = 1.0 / (T - 1) if T > 1 else float("inf")
    inv_ttm1 = 1.0 / (T * (T - 1)) if T > 1 else float("inf")

    kernel = functools.partial(_cov_pool_kernel, n=n, g=g,
                               inv_tm1=inv_tm1, inv_ttm1=inv_ttm1)

    compiler_kwargs = dict(dimension_semantics=("parallel", "arbitrary"))
    if vmem_limit is not None:
        compiler_kwargs["vmem_limit_bytes"] = int(vmem_limit)

    out = pl.pallas_call(
        kernel,
        out_shape=jax.ShapeDtypeStruct((G_pad, g, n, n), jnp.float32),
        grid_spec=pltpu.PrefetchScalarGridSpec(
            num_scalar_prefetch=0,
            grid=(gb, nk),                                    # reduction axis last
            in_specs=[pl.BlockSpec((gpb, P, tk), lambda b, k: (b, 0, k))],
            out_specs=pl.BlockSpec((gpb, g, n, n), lambda b, k: (b, 0, 0, 0)),
            scratch_shapes=[
                pltpu.VMEM((gpb, P, P), jnp.float32),         # packed Gram accumulator
                pltpu.VMEM((gpb, P, 1), jnp.float32),         # per-channel sums
            ],
        ),
        compiler_params=pltpu.CompilerParams(**compiler_kwargs),
    )(fg)

    out = out.reshape(B_pad, n, n)[:B]
    return out[:, None, :, :]                                 # (B, 1, n, n)


def _reference_cov_pool(f):
    """Pure-JAX reference matching the PyTorch functional.cov_pool + add_id."""
    f = jnp.squeeze(f, axis=1).astype(jnp.float32)
    B, n, T = f.shape
    gram = jnp.einsum("bnt,bmt->bnm", f, f)
    s = jnp.sum(f, axis=-1, keepdims=True)
    X = gram / (T - 1) - (1.0 / (T * (T - 1))) * (s @ jnp.swapaxes(s, -1, -2))
    tr = jnp.trace(X, axis1=-2, axis2=-1)[:, None, None]
    X = X + 1e-6 * tr * jnp.eye(n, dtype=X.dtype)[None]
    return X[:, None, :, :]


if __name__ == "__main__":
    key = jax.random.PRNGKey(0)
    k1, k2, k3 = jax.random.split(key, 3)

    # Case 1: defaults -- packed Gram (g = 4 batch elements per MXU matmul), single T tile.
    B, n, T = 4, 16, 64
    x1 = jax.random.normal(k1, (B, 1, n, T), dtype=jnp.float32)
    out1 = jax.block_until_ready(cov_pool(x1, reg_mode="add_id"))
    ref1 = _reference_cov_pool(x1)
    assert out1.shape == (B, 1, n, n), out1.shape
    # Tolerance allows for MXU f32 multi-pass rounding differences vs the XLA reference.
    assert jnp.allclose(out1, ref1, atol=1e-4, rtol=1e-4), "case 1 mismatch"

    # Case 2: forces the T-reduction accumulator path, multiple batch-group grid
    # steps, and batch/T zero padding (B 5 -> 6, T 200 -> 256) with packing g=2.
    B2, n2, T2 = 5, 16, 200
    x2 = jax.random.normal(k2, (B2, 1, n2, T2), dtype=jnp.float32)
    out2 = jax.block_until_ready(
        cov_pool(x2, reg_mode="add_id", pack=2, block_b=2, block_t=128))
    ref2 = _reference_cov_pool(x2)
    assert out2.shape == (B2, 1, n2, n2), out2.shape
    assert jnp.allclose(out2, ref2, atol=1e-4, rtol=1e-4), "case 2 mismatch"

    # Case 3: default auto-tiling with T > 2048 (exercises the automatic T split).
    B3, n3, T3 = 2, 8, 2304
    x3 = jax.random.normal(k3, (B3, 1, n3, T3), dtype=jnp.float32)
    out3 = jax.block_until_ready(cov_pool(x3, reg_mode="add_id"))
    ref3 = _reference_cov_pool(x3)
    assert out3.shape == (B3, 1, n3, n3), out3.shape
    assert jnp.allclose(out3, ref3, atol=1e-4, rtol=1e-4), "case 3 mismatch"

    print("KERNEL_OK")
</pallas_src>

<mosaic_0001>
module attributes {stable_mosaic.version = 11 : i64} {
  func.func @_cov_pool_kernel(%arg0: i32, %arg1: i32, %arg2: memref<1x64x64xf32, #tpu.memory_space<vmem>>, %arg3: memref<1x4x16x16xf32, #tpu.memory_space<vmem>>, %arg4: memref<1x64x64xf32, #tpu.memory_space<vmem>>, %arg5: memref<1x64x1xf32, #tpu.memory_space<vmem>>) attributes {dimension_semantics = [#tpu.dimension_semantics<parallel>, #tpu.dimension_semantics<arbitrary>], iteration_bounds = array<i64: 1, 1>, scalar_prefetch = 0 : i64, scratch_operands = 2 : i64, tpu.core_type = #tpu.core_type<tc>, window_params = [{transform_indices = @transform_0, window_bounds = array<i64: 1, 64, 64>}, {transform_indices = @transform_1, window_bounds = array<i64: 1, 4, 16, 16>}]} {
    %c0_i32 = arith.constant 0 : i32
    %0 = arith.cmpi eq, %arg1, %c0_i32 : i32
    %1 = arith.extui %0 : i1 to i32
    %c0_i32_0 = arith.constant 0 : i32
    %2 = arith.cmpi ne, %1, %c0_i32_0 : i32
    scf.if %2 {
      %cst_18 = arith.constant 0.000000e+00 : f32
      %16 = vector.broadcast %cst_18 : f32 to vector<1x64x64xf32>
      %c0_19 = arith.constant 0 : index
      %c0_20 = arith.constant 0 : index
      %c0_21 = arith.constant 0 : index
      %17 = vector.load %arg4[%c0_19, %c0_20, %c0_21] : memref<1x64x64xf32, #tpu.memory_space<vmem>>, vector<1x64x64xf32>
      tpu.vector_store %arg4[%c0_19, %c0_20, %c0_21], %16 {strides = array<i32>} : memref<1x64x64xf32, #tpu.memory_space<vmem>>, vector<1x64x64xf32>,
      %cst_22 = arith.constant 0.000000e+00 : f32
      %18 = vector.broadcast %cst_22 : f32 to vector<1x64x1xf32>
      %c0_23 = arith.constant 0 : index
      %c0_24 = arith.constant 0 : index
      %c0_25 = arith.constant 0 : index
      %19 = vector.load %arg5[%c0_23, %c0_24, %c0_25] : memref<1x64x1xf32, #tpu.memory_space<vmem>>, vector<1x64x1xf32>
      tpu.vector_store %arg5[%c0_23, %c0_24, %c0_25], %18 {strides = array<i32>} : memref<1x64x1xf32, #tpu.memory_space<vmem>>, vector<1x64x1xf32>,
    } else {
    }
    %c0 = arith.constant 0 : index
    %c0_1 = arith.constant 0 : index
    %c0_2 = arith.constant 0 : index
    %3 = vector.load %arg2[%c0, %c0_1, %c0_2] : memref<1x64x64xf32, #tpu.memory_space<vmem>>, vector<1x64x64xf32>
    %c0_3 = arith.constant 0 : index
    %c0_4 = arith.constant 0 : index
    %c0_5 = arith.constant 0 : index
    %4 = vector.load %arg4[%c0_3, %c0_4, %c0_5] : memref<1x64x64xf32, #tpu.memory_space<vmem>>, vector<1x64x64xf32>
    "tpu.trace_start"() <{level = 10 : i32, message = "gpt,gqt->gpq"}> : () -> ()
    %cst = arith.constant dense<0.000000e+00> : vector<1x64x64xf32>
    %5 = tpu.matmul %3, %3, %cst {dimension_numbers = #tpu.dot_dimension_numbers<[2], [2], [1], [1], [0, 0, 0, 1, 1, 1], [0], [0]>} : vector<1x64x64xf32>, vector<1x64x64xf32>, vector<1x64x64xf32> -> vector<1x64x64xf32>
    "tpu.trace_stop"() : () -> ()
    %6 = arith.addf %4, %5 : vector<1x64x64xf32>
    %c0_6 = arith.constant 0 : index
    %c0_7 = arith.constant 0 : index
    %c0_8 = arith.constant 0 : index
    %7 = vector.load %arg4[%c0_6, %c0_7, %c0_8] : memref<1x64x64xf32, #tpu.memory_space<vmem>>, vector<1x64x64xf32>
    tpu.vector_store %arg4[%c0_6, %c0_7, %c0_8], %6 {strides = array<i32>} : memref<1x64x64xf32, #tpu.memory_space<vmem>>, vector<1x64x64xf32>,
    %c0_9 = arith.constant 0 : index
    %c0_10 = arith.constant 0 : index
    %c0_11 = arith.constant 0 : index
    %8 = vector.load %arg5[%c0_9, %c0_10, %c0_11] : memref<1x64x1xf32, #tpu.memory_space<vmem>>, vector<1x64x1xf32>
    %cst_12 = arith.constant dense<0.000000e+00> : vector<1x64xf32>
    %9 = vector.multi_reduction <add>, %3, %cst_12 [2] : vector<1x64x64xf32> to vector<1x64xf32>
    %10 = vector.shape_cast %9 : vector<1x64xf32> to vector<1x64x1xf32>
    %11 = arith.addf %8, %10 : vector<1x64x1xf32>
    %c0_13 = arith.constant 0 : index
    %c0_14 = arith.constant 0 : index
    %c0_15 = arith.constant 0 : index
    %12 = vector.load %arg5[%c0_13, %c0_14, %c0_15] : memref<1x64x1xf32, #tpu.memory_space<vmem>>, vector<1x64x1xf32>
    tpu.vector_store %arg5[%c0_13, %c0_14, %c0_15], %11 {strides = array<i32>} : memref<1x64x1xf32, #tpu.memory_space<vmem>>, vector<1x64x1xf32>,
    %c0_i32_16 = arith.constant 0 : i32
    %13 = arith.cmpi eq, %arg1, %c0_i32_16 : i32
    %14 = arith.extui %13 : i1 to i32
    %c0_i32_17 = arith.constant 0 : i32
    %15 = arith.cmpi ne, %14, %c0_i32_17 : i32
    scf.if %15 {
      %16 = tpu.iota {dimensions = array<i32: 1>} : vector<1x16x16xi32>
      %17 = tpu.iota {dimensions = array<i32: 2>} : vector<1x16x16xi32>
      %18 = arith.cmpi eq, %16, %17 : vector<1x16x16xi32>
      %c0_18 = arith.constant 0 : index
      %c0_19 = arith.constant 0 : index
      %c0_20 = arith.constant 0 : index
      %19 = vector.load %arg4[%c0_18, %c0_19, %c0_20] : memref<1x64x64xf32, #tpu.memory_space<vmem>>, vector<1x16x16xf32>
      %c0_21 = arith.constant 0 : index
      %c0_22 = arith.constant 0 : index
      %c0_23 = arith.constant 0 : index
      %20 = vector.load %arg5[%c0_21, %c0_22, %c0_23] : memref<1x64x1xf32, #tpu.memory_space<vmem>>, vector<1x16x1xf32>
      %cst_24 = arith.constant 0.000000e+00 : f32
      %21 = vector.shape_cast %20 : vector<1x16x1xf32> to vector<1x16x1xf32>
      %22 = vector.broadcast %21 : vector<1x16x1xf32> to vector<1x16x16xf32>
      %23 = vector.broadcast %cst_24 : f32 to vector<1x16x16xf32>
      %24 = arith.select %18, %22, %23 : vector<1x16x16xi1>, vector<1x16x16xf32>
      %cst_25 = arith.constant dense<0.000000e+00> : vector<1x16xf32>
      %25 = vector.multi_reduction <add>, %24, %cst_25 [1] : vector<1x16x16xf32> to vector<1x16xf32>
      %26 = vector.shape_cast %25 : vector<1x16xf32> to vector<1x1x16xf32>
      %cst_26 = arith.constant 0.0158730168 : f32
      %27 = vector.broadcast %cst_26 : f32 to vector<1x16x16xf32>
      %28 = arith.mulf %19, %27 : vector<1x16x16xf32>
      %29 = vector.broadcast %20 : vector<1x16x1xf32> to vector<1x16x16xf32>
      %30 = vector.broadcast %26 : vector<1x1x16xf32> to vector<1x16x16xf32>
      %31 = arith.mulf %29, %30 : vector<1x16x16xf32>
      %cst_27 = arith.constant 2.48015887E-4 : f32
      %32 = vector.broadcast %cst_27 : f32 to vector<1x16x16xf32>
      %33 = arith.mulf %31, %32 : vector<1x16x16xf32>
      %34 = arith.subf %28, %33 : vector<1x16x16xf32>
      %cst_28 = arith.constant 0.000000e+00 : f32
      %35 = vector.broadcast %cst_28 : f32 to vector<1x16x16xf32>
      %36 = arith.select %18, %34, %35 : vector<1x16x16xi1>, vector<1x16x16xf32>
      %cst_29 = arith.constant dense<0.000000e+00> : vector<1xf32>
      %37 = vector.multi_reduction <add>, %36, %cst_29 [1, 2] : vector<1x16x16xf32> to vector<1xf32>
      %38 = vector.shape_cast %37 : vector<1xf32> to vector<1x1x1xf32>
      %cst_30 = arith.constant 9.99999997E-7 : f32
      %39 = vector.broadcast %cst_30 : f32 to vector<1x1x1xf32>
      %40 = arith.mulf %39, %38 : vector<1x1x1xf32>
      %41 = vector.broadcast %40 : vector<1x1x1xf32> to vector<1x16x16xf32>
      %42 = arith.addf %34, %41 : vector<1x16x16xf32>
      %43 = arith.select %18, %42, %34 : vector<1x16x16xi1>, vector<1x16x16xf32>
      %c0_31 = arith.constant 0 : index
      %c0_32 = arith.constant 0 : index
      %c0_33 = arith.constant 0 : index
      %c0_34 = arith.constant 0 : index
      %44 = vector.load %arg3[%c0_31, %c0_32, %c0_33, %c0_34] : memref<1x4x16x16xf32, #tpu.memory_space<vmem>>, vector<1x1x16x16xf32>
      %45 = vector.shape_cast %44 : vector<1x1x16x16xf32> to vector<1x16x16xf32>
      %46 = vector.shape_cast %43 : vector<1x16x16xf32> to vector<1x1x16x16xf32>
      tpu.vector_store %arg3[%c0_31, %c0_32, %c0_33, %c0_34], %46 {strides = array<i32>} : memref<1x4x16x16xf32, #tpu.memory_space<vmem>>, vector<1x1x16x16xf32>,
      %c0_35 = arith.constant 0 : index
      %c16 = arith.constant 16 : index
      %c16_36 = arith.constant 16 : index
      %47 = vector.load %arg4[%c0_35, %c16, %c16_36] : memref<1x64x64xf32, #tpu.memory_space<vmem>>, vector<1x16x16xf32>
      %c0_37 = arith.constant 0 : index
      %c16_38 = arith.constant 16 : index
      %c0_39 = arith.constant 0 : index
      %48 = vector.load %arg5[%c0_37, %c16_38, %c0_39] : memref<1x64x1xf32, #tpu.memory_space<vmem>>, vector<1x16x1xf32>
      %cst_40 = arith.constant 0.000000e+00 : f32
      %49 = vector.shape_cast %48 : vector<1x16x1xf32> to vector<1x16x1xf32>
      %50 = vector.broadcast %49 : vector<1x16x1xf32> to vector<1x16x16xf32>
      %51 = vector.broadcast %cst_40 : f32 to vector<1x16x16xf32>
      %52 = arith.select %18, %50, %51 : vector<1x16x16xi1>, vector<1x16x16xf32>
      %cst_41 = arith.constant dense<0.000000e+00> : vector<1x16xf32>
      %53 = vector.multi_reduction <add>, %52, %cst_41 [1] : vector<1x16x16xf32> to vector<1x16xf32>
      %54 = vector.shape_cast %53 : vector<1x16xf32> to vector<1x1x16xf32>
      %cst_42 = arith.constant 0.0158730168 : f32
      %55 = vector.broadcast %cst_42 : f32 to vector<1x16x16xf32>
      %56 = arith.mulf %47, %55 : vector<1x16x16xf32>
      %57 = vector.broadcast %48 : vector<1x16x1xf32> to vector<1x16x16xf32>
      %58 = vector.broadcast %54 : vector<1x1x16xf32> to vector<1x16x16xf32>
      %59 = arith.mulf %57, %58 : vector<1x16x16xf32>
      %cst_43 = arith.constant 2.48015887E-4 : f32
      %60 = vector.broadcast %cst_43 : f32 to vector<1x16x16xf32>
      %61 = arith.mulf %59, %60 : vector<1x16x16xf32>
      %62 = arith.subf %56, %61 : vector<1x16x16xf32>
      %cst_44 = arith.constant 0.000000e+00 : f32
      %63 = vector.broadcast %cst_44 : f32 to vector<1x16x16xf32>
      %64 = arith.select %18, %62, %63 : vector<1x16x16xi1>, vector<1x16x16xf32>
      %cst_45 = arith.constant dense<0.000000e+00> : vector<1xf32>
      %65 = vector.multi_reduction <add>, %64, %cst_45 [1, 2] : vector<1x16x16xf32> to vector<1xf32>
      %66 = vector.shape_cast %65 : vector<1xf32> to vector<1x1x1xf32>
      %cst_46 = arith.constant 9.99999997E-7 : f32
      %67 = vector.broadcast %cst_46 : f32 to vector<1x1x1xf32>
      %68 = arith.mulf %67, %66 : vector<1x1x1xf32>
      %69 = vector.broadcast %68 : vector<1x1x1xf32> to vector<1x16x16xf32>
      %70 = arith.addf %62, %69 : vector<1x16x16xf32>
      %71 = arith.select %18, %70, %62 : vector<1x16x16xi1>, vector<1x16x16xf32>
      %c0_47 = arith.constant 0 : index
      %c1 = arith.constant 1 : index
      %c0_48 = arith.constant 0 : index
      %c0_49 = arith.constant 0 : index
      %72 = vector.load %arg3[%c0_47, %c1, %c0_48, %c0_49] : memref<1x4x16x16xf32, #tpu.memory_space<vmem>>, vector<1x1x16x16xf32>
      %73 = vector.shape_cast %72 : vector<1x1x16x16xf32> to vector<1x16x16xf32>
      %74 = vector.shape_cast %71 : vector<1x16x16xf32> to vector<1x1x16x16xf32>
      tpu.vector_store %arg3[%c0_47, %c1, %c0_48, %c0_49], %74 {strides = array<i32>} : memref<1x4x16x16xf32, #tpu.memory_space<vmem>>, vector<1x1x16x16xf32>,
      %c0_50 = arith.constant 0 : index
      %c32 = arith.constant 32 : index
      %c32_51 = arith.constant 32 : index
      %75 = vector.load %arg4[%c0_50, %c32, %c32_51] : memref<1x64x64xf32, #tpu.memory_space<vmem>>, vector<1x16x16xf32>
      %c0_52 = arith.constant 0 : index
      %c32_53 = arith.constant 32 : index
      %c0_54 = arith.constant 0 : index
      %76 = vector.load %arg5[%c0_52, %c32_53, %c0_54] : memref<1x64x1xf32, #tpu.memory_space<vmem>>, vector<1x16x1xf32>
      %cst_55 = arith.constant 0.000000e+00 : f32
      %77 = vector.shape_cast %76 : vector<1x16x1xf32> to vector<1x16x1xf32>
      %78 = vector.broadcast %77 : vector<1x16x1xf32> to vector<1x16x16xf32>
      %79 = vector.broadcast %cst_55 : f32 to vector<1x16x16xf32>
      %80 = arith.select %18, %78, %79 : vector<1x16x16xi1>, vector<1x16x16xf32>
      %cst_56 = arith.constant dense<0.000000e+00> : vector<1x16xf32>
      %81 = vector.multi_reduction <add>, %80, %cst_56 [1] : vector<1x16x16xf32> to vector<1x16xf32>
      %82 = vector.shape_cast %81 : vector<1x16xf32> to vector<1x1x16xf32>
      %cst_57 = arith.constant 0.0158730168 : f32
      %83 = vector.broadcast %cst_57 : f32 to vector<1x16x16xf32>
      %84 = arith.mulf %75, %83 : vector<1x16x16xf32>
      %85 = vector.broadcast %76 : vector<1x16x1xf32> to vector<1x16x16xf32>
      %86 = vector.broadcast %82 : vector<1x1x16xf32> to vector<1x16x16xf32>
      %87 = arith.mulf %85, %86 : vector<1x16x16xf32>
      %cst_58 = arith.constant 2.48015887E-4 : f32
      %88 = vector.broadcast %cst_58 : f32 to vector<1x16x16xf32>
      %89 = arith.mulf %87, %88 : vector<1x16x16xf32>
      %90 = arith.subf %84, %89 : vector<1x16x16xf32>
      %cst_59 = arith.constant 0.000000e+00 : f32
      %91 = vector.broadcast %cst_59 : f32 to vector<1x16x16xf32>
      %92 = arith.select %18, %90, %91 : vector<1x16x16xi1>, vector<1x16x16xf32>
      %cst_60 = arith.constant dense<0.000000e+00> : vector<1xf32>
      %93 = vector.multi_reduction <add>, %92, %cst_60 [1, 2] : vector<1x16x16xf32> to vector<1xf32>
      %94 = vector.shape_cast %93 : vector<1xf32> to vector<1x1x1xf32>
      %cst_61 = arith.constant 9.99999997E-7 : f32
      %95 = vector.broadcast %cst_61 : f32 to vector<1x1x1xf32>
      %96 = arith.mulf %95, %94 : vector<1x1x1xf32>
      %97 = vector.broadcast %96 : vector<1x1x1xf32> to vector<1x16x16xf32>
      %98 = arith.addf %90, %97 : vector<1x16x16xf32>
      %99 = arith.select %18, %98, %90 : vector<1x16x16xi1>, vector<1x16x16xf32>
      %c0_62 = arith.constant 0 : index
      %c2 = arith.constant 2 : index
      %c0_63 = arith.constant 0 : index
      %c0_64 = arith.constant 0 : index
      %100 = vector.load %arg3[%c0_62, %c2, %c0_63, %c0_64] : memref<1x4x16x16xf32, #tpu.memory_space<vmem>>, vector<1x1x16x16xf32>
      %101 = vector.shape_cast %100 : vector<1x1x16x16xf32> to vector<1x16x16xf32>
      %102 = vector.shape_cast %99 : vector<1x16x16xf32> to vector<1x1x16x16xf32>
      tpu.vector_store %arg3[%c0_62, %c2, %c0_63, %c0_64], %102 {strides = array<i32>} : memref<1x4x16x16xf32, #tpu.memory_space<vmem>>, vector<1x1x16x16xf32>,
      %c0_65 = arith.constant 0 : index
      %c48 = arith.constant 48 : index
      %c48_66 = arith.constant 48 : index
      %103 = vector.load %arg4[%c0_65, %c48, %c48_66] : memref<1x64x64xf32, #tpu.memory_space<vmem>>, vector<1x16x16xf32>
      %c0_67 = arith.constant 0 : index
      %c48_68 = arith.constant 48 : index
      %c0_69 = arith.constant 0 : index
      %104 = vector.load %arg5[%c0_67, %c48_68, %c0_69] : memref<1x64x1xf32, #tpu.memory_space<vmem>>, vector<1x16x1xf32>
      %cst_70 = arith.constant 0.000000e+00 : f32
      %105 = vector.shape_cast %104 : vector<1x16x1xf32> to vector<1x16x1xf32>
      %106 = vector.broadcast %105 : vector<1x16x1xf32> to vector<1x16x16xf32>
      %107 = vector.broadcast %cst_70 : f32 to vector<1x16x16xf32>
      %108 = arith.select %18, %106, %107 : vector<1x16x16xi1>, vector<1x16x16xf32>
      %cst_71 = arith.constant dense<0.000000e+00> : vector<1x16xf32>
      %109 = vector.multi_reduction <add>, %108, %cst_71 [1] : vector<1x16x16xf32> to vector<1x16xf32>
      %110 = vector.shape_cast %109 : vector<1x16xf32> to vector<1x1x16xf32>
      %cst_72 = arith.constant 0.0158730168 : f32
      %111 = vector.broadcast %cst_72 : f32 to vector<1x16x16xf32>
      %112 = arith.mulf %103, %111 : vector<1x16x16xf32>
      %113 = vector.broadcast %104 : vector<1x16x1xf32> to vector<1x16x16xf32>
      %114 = vector.broadcast %110 : vector<1x1x16xf32> to vector<1x16x16xf32>
      %115 = arith.mulf %113, %114 : vector<1x16x16xf32>
      %cst_73 = arith.constant 2.48015887E-4 : f32
      %116 = vector.broadcast %cst_73 : f32 to vector<1x16x16xf32>
      %117 = arith.mulf %115, %116 : vector<1x16x16xf32>
      %118 = arith.subf %112, %117 : vector<1x16x16xf32>
      %cst_74 = arith.constant 0.000000e+00 : f32
      %119 = vector.broadcast %cst_74 : f32 to vector<1x16x16xf32>
      %120 = arith.select %18, %118, %119 : vector<1x16x16xi1>, vector<1x16x16xf32>
      %cst_75 = arith.constant dense<0.000000e+00> : vector<1xf32>
      %121 = vector.multi_reduction <add>, %120, %cst_75 [1, 2] : vector<1x16x16xf32> to vector<1xf32>
      %122 = vector.shape_cast %121 : vector<1xf32> to vector<1x1x1xf32>
      %cst_76 = arith.constant 9.99999997E-7 : f32
      %123 = vector.broadcast %cst_76 : f32 to vector<1x1x1xf32>
      %124 = arith.mulf %123, %122 : vector<1x1x1xf32>
      %125 = vector.broadcast %124 : vector<1x1x1xf32> to vector<1x16x16xf32>
      %126 = arith.addf %118, %125 : vector<1x16x16xf32>
      %127 = arith.select %18, %126, %118 : vector<1x16x16xi1>, vector<1x16x16xf32>
      %c0_77 = arith.constant 0 : index
      %c3 = arith.constant 3 : index
      %c0_78 = arith.constant 0 : index
      %c0_79 = arith.constant 0 : index
      %128 = vector.load %arg3[%c0_77, %c3, %c0_78, %c0_79] : memref<1x4x16x16xf32, #tpu.memory_space<vmem>>, vector<1x1x16x16xf32>
      %129 = vector.shape_cast %128 : vector<1x1x16x16xf32> to vector<1x16x16xf32>
      %130 = vector.shape_cast %127 : vector<1x16x16xf32> to vector<1x1x16x16xf32>
      tpu.vector_store %arg3[%c0_77, %c3, %c0_78, %c0_79], %130 {strides = array<i32>} : memref<1x4x16x16xf32, #tpu.memory_space<vmem>>, vector<1x1x16x16xf32>,
    } else {
    }
    return
  }
  func.func @transform_0(%arg0: i32, %arg1: i32) -> (i32, i32, i32) {
    %c0_i32 = arith.constant 0 : i32
    %c0_i32_0 = arith.constant 0 : i32
    return %arg0, %c0_i32, %arg1 : i32, i32, i32
  }
  func.func @transform_1(%arg0: i32, %arg1: i32) -> (i32, i32, i32, i32) {
    %c0_i32 = arith.constant 0 : i32
    %c0_i32_0 = arith.constant 0 : i32
    %c0_i32_1 = arith.constant 0 : i32
    %c0_i32_2 = arith.constant 0 : i32
    return %arg0, %c0_i32, %c0_i32_0, %c0_i32_1 : i32, i32, i32, i32
  }
}

</mosaic_0001>

<llo_original>
// kernel: tpu_custom_call.1
$region0: #{tpu_custom_call.1}
  #allocation0 [shape = 'u32[]', space=smem, size = 0x4, offset = 0x4, fixed_abs, tag = 'smem constant byte address 0x4 - core index']
  #allocation1 [shape = 'u32[72,128]{1,0:T(1,128)}', space=vmem, size = 0x9000, scoped, tag = 'internal scratch']
  #allocation2 [shape = 'f32[1,64,64]{2,1,0:T(8,128)}', space=vmem, size = 0x8000, scoped, tag = 'scratch operand']
  #allocation3 [shape = 'f32[1,64,1]{2,1,0:T(8,128)}', space=vmem, size = 0x8000, scoped, tag = 'scratch operand']
  %s0 = inlined_call_operand.hbm [shape: f32[1,64,64], index: 0, kind: input, shape index: {}]
  %s1 = inlined_call_operand.hbm [shape: f32[1,4,16,16], index: 1, kind: output, shape index: {}]
  %s2 = sld [smem:[#allocation0]]
  $region26: #{tpu_custom_call.1} parent=0
    _
  %s4 = ssub.s32 1, %s2
  %s5 = scalar_select 0, %s4, %s2
  $region1: #{tpu_custom_call.1} parent=0
    #allocation4 [shape = 'u8[32768]{0}', space=vmem, size = 0x8000, scoped, tag = 'input window, operand 0, single buffered']
    #allocation5 [shape = 's32[1]{0}', space=sflag, size = 0x4, scoped, tag = 'scoped memory for tpu_custom_call.1']
    #allocation6 [shape = 's32[1]{0}', space=sflag, size = 0x4, scoped, tag = 'scoped memory for tpu_custom_call.1']
    #allocation7 [shape = 'u8[32768]{0}', space=vmem, size = 0x8000, scoped, tag = 'output window, operand 0, single buffered']
    %6 = vsyncpa [#allocation5], 0
    %7 = vsyncpa [#allocation6], 0
    // Predicated region
    $region2: #{tpu_custom_call.1} parent=1 // pred_check
      _
    $region3: #{tpu_custom_call.1} parent=1 // pred_check_branch
      %9 = sbr.rel (0) target = $region5
    $region4: #{tpu_custom_call.1} parent=1 // pred_region
      %11 = vsyncadd [#allocation5], 0
      %s12 = sshll.u32 %s0, 4
      %s13 = int_to_ptr.hbm [resolvable:$true] %s12
      %s14 = sshll.u32 [#allocation4], 4
      %s15 = int_to_ptr.vmem [resolvable:$true] %s14
      %20 = dma.hbm_to_vmem [thread:$0]  %s13, 1024, %s15, [#allocation5], 128, 128, 8
    $region5: #{tpu_custom_call.1} parent=1 // pred_fallthru
      _
    // Predicated region
    $region6: #{tpu_custom_call.1} parent=1 // pred_check
      _
    $region7: #{tpu_custom_call.1} parent=1 // pred_check_branch
      %22 = sbr.rel (0) target = $region9
    $region8: #{tpu_custom_call.1} parent=1 // pred_region
      %24 = dma.done [#allocation5], 1024
    $region9: #{tpu_custom_call.1} parent=1 // pred_fallthru
      _
    %p25 = scmp.eq.s32.totalorder 0, 0
    // Predicated region
    $region10: #{tpu_custom_call.1} parent=1 // pred_check
      %p26 = pneg %p25
    $region11: #{tpu_custom_call.1} parent=1 // pred_check_branch
      %28 = sbr.rel (%p26) target = $region13
    $region12: #{tpu_custom_call.1} parent=1 // pred_region
      %vm29 = vcmask 523264
      %30 = vst.msk [vmem:[#allocation2] sm:$0xff] %vm29, 0.0
      %31 = vst.msk [vmem:[#allocation2 + $0x8] sm:$0xff] %vm29, 0.0
      %32 = vst.msk [vmem:[#allocation2 + $0x10] sm:$0xff] %vm29, 0.0
      %33 = vst.msk [vmem:[#allocation2 + $0x18] sm:$0xff] %vm29, 0.0
      %34 = vst.msk [vmem:[#allocation2 + $0x20] sm:$0xff] %vm29, 0.0
      %35 = vst.msk [vmem:[#allocation2 + $0x28] sm:$0xff] %vm29, 0.0
      %36 = vst.msk [vmem:[#allocation2 + $0x30] sm:$0xff] %vm29, 0.0
      %37 = vst.msk [vmem:[#allocation2 + $0x38] sm:$0xff] %vm29, 0.0
      %vm38 = vcmask 7168
      %39 = vst.msk [vmem:[#allocation3] sm:$0xff] %vm38, 0.0
      %40 = vst.msk [vmem:[#allocation3 + $0x8] sm:$0xff] %vm38, 0.0
      %41 = vst.msk [vmem:[#allocation3 + $0x10] sm:$0xff] %vm38, 0.0
      %42 = vst.msk [vmem:[#allocation3 + $0x18] sm:$0xff] %vm38, 0.0
      %43 = vst.msk [vmem:[#allocation3 + $0x20] sm:$0xff] %vm38, 0.0
      %44 = vst.msk [vmem:[#allocation3 + $0x28] sm:$0xff] %vm38, 0.0
      %45 = vst.msk [vmem:[#allocation3 + $0x30] sm:$0xff] %vm38, 0.0
      %46 = vst.msk [vmem:[#allocation3 + $0x38] sm:$0xff] %vm38, 0.0
    $region13: #{tpu_custom_call.1} parent=1 // pred_fallthru
      _
    %v47 = vld [vmem:[#allocation4] sm:$0xff]
    %v48 = vld [vmem:[#allocation4 + $0x8] sm:$0xff]
    %v49 = vld [vmem:[#allocation4 + $0x10] sm:$0xff]
    %v50 = vld [vmem:[#allocation4 + $0x18] sm:$0xff]
    %v51 = vld [vmem:[#allocation4 + $0x20] sm:$0xff]
    %v52 = vld [vmem:[#allocation4 + $0x28] sm:$0xff]
    %v53 = vld [vmem:[#allocation4 + $0x30] sm:$0xff]
    %v54 = vld [vmem:[#allocation4 + $0x38] sm:$0xff]
    %v55 = vld [vmem:[#allocation2] sm:$0xff]
    %v56 = vld [vmem:[#allocation2 + $0x8] sm:$0xff]
    %v57 = vld [vmem:[#allocation2 + $0x10] sm:$0xff]
    %v58 = vld [vmem:[#allocation2 + $0x18] sm:$0xff]
    %v59 = vld [vmem:[#allocation2 + $0x20] sm:$0xff]
    %v60 = vld [vmem:[#allocation2 + $0x28] sm:$0xff]
    %v61 = vld [vmem:[#allocation2 + $0x30] sm:$0xff]
    %v62 = vld [vmem:[#allocation2 + $0x38] sm:$0xff]
    %vm63 = vcmask 523264
    %v65 = vsel %vm63, %v47, 0
    %v68 = vsel %vm63, %v48, 0
    %v71 = vsel %vm63, %v49, 0
    %v74 = vsel %vm63, %v50, 0
    %v77 = vsel %vm63, %v51, 0
    %v80 = vsel %vm63, %v52, 0
    %v83 = vsel %vm63, %v53, 0
    %v86 = vsel %vm63, %v54, 0
    %88 = vmatpush.xpose.msra.mxu0 0.0
    %89 = vmatpush.xpose.msra.mxu0 0.0
    %90 = vmatpush.xpose.msra.mxu0 0.0
    %91 = vmatpush.xpose.msra.mxu0 0.0
    %92 = vmatpush.xpose.msra.mxu0 0.0
    %93 = vmatpush.xpose.msra.mxu0 0.0
    %94 = vmatpush.xpose.msra.mxu0 0.0
    %95 = vmatpush.xpose.msra.mxu0 0.0
    %96 = vmatpush.xpose.msra.mxu0 %v86
    %97 = vmatpush.xpose.msra.mxu0 %v83
    %98 = vmatpush.xpose.msra.mxu0 %v80
    %99 = vmatpush.xpose.msra.mxu0 %v77
    %100 = vmatpush.xpose.msra.mxu0 %v74
    %101 = vmatpush.xpose.msra.mxu0 %v71
    %102 = vmatpush.xpose.msra.mxu0 %v68
    %103 = vmatpush.xpose.msra.mxu0 %v65
    %104 = vmatmul.f32.gmra.mxu0 %v65
    %v105 = vpop.f32.mrf.mxu0
    %v106 = vadd.f32 0.0, %v105
    %107 = vmatmul.f32.gmra.mxu0 %v68
    %v108 = vpop.f32.mrf.mxu0
    %v109 = vadd.f32 0.0, %v108
    %110 = vmatmul.f32.gmra.mxu0 %v71
    %v111 = vpop.f32.mrf.mxu0
    %v112 = vadd.f32 0.0, %v111
    %113 = vmatmul.f32.gmra.mxu0 %v74
    %v114 = vpop.f32.mrf.mxu0
    %v115 = vadd.f32 0.0, %v114
    %116 = vmatmul.f32.gmra.mxu0 %v77
    %v117 = vpop.f32.mrf.mxu0
    %v118 = vadd.f32 0.0, %v117
    %119 = vmatmul.f32.gmra.mxu0 %v80
    %v120 = vpop.f32.mrf.mxu0
    %v121 = vadd.f32 0.0, %v120
    %122 = vmatmul.f32.gmra.mxu0 %v83
    %v123 = vpop.f32.mrf.mxu0
    %v124 = vadd.f32 0.0, %v123
    %125 = vmatmul.f32.gmra.mxu0 %v86
    %v126 = vpop.f32.mrf.mxu0
    %v127 = vadd.f32 0.0, %v126
    %128 = vdwg.mxu0
    %v129 = vadd.f32 %v55, %v106
    %v130 = vadd.f32 %v56, %v109
    %v131 = vadd.f32 %v57, %v112
    %v132 = vadd.f32 %v58, %v115
    %v133 = vadd.f32 %v59, %v118
    %v134 = vadd.f32 %v60, %v121
    %v135 = vadd.f32 %v61, %v124
    %v136 = vadd.f32 %v62, %v127
    %137 = vst.msk [vmem:[#allocation2] sm:$0xff] %vm63, %v129
    %138 = vst.msk [vmem:[#allocation2 + $0x8] sm:$0xff] %vm63, %v130
    %139 = vst.msk [vmem:[#allocation2 + $0x10] sm:$0xff] %vm63, %v131
    %140 = vst.msk [vmem:[#allocation2 + $0x18] sm:$0xff] %vm63, %v132
    %141 = vst.msk [vmem:[#allocation2 + $0x20] sm:$0xff] %vm63, %v133
    %142 = vst.msk [vmem:[#allocation2 + $0x28] sm:$0xff] %vm63, %v134
    %143 = vst.msk [vmem:[#allocation2 + $0x30] sm:$0xff] %vm63, %v135
    %144 = vst.msk [vmem:[#allocation2 + $0x38] sm:$0xff] %vm63, %v136
    %v145 = vld [vmem:[#allocation3] sm:$0xff]
    %v146 = vld [vmem:[#allocation3 + $0x8] sm:$0xff]
    %v147 = vld [vmem:[#allocation3 + $0x10] sm:$0xff]
    %v148 = vld [vmem:[#allocation3 + $0x18] sm:$0xff]
    %v149 = vld [vmem:[#allocation3 + $0x20] sm:$0xff]
    %v150 = vld [vmem:[#allocation3 + $0x28] sm:$0xff]
    %v151 = vld [vmem:[#allocation3 + $0x30] sm:$0xff]
    %v152 = vld [vmem:[#allocation3 + $0x38] sm:$0xff]
    %v153 = vsel %vm63, %v47, 0.0
    %154 = vadd.xlane.f32.xlu0 %v153
    %v155 = vpop.xlane.xlu0 %154
    %v156 = vsel %vm63, %v48, 0.0
    %157 = vadd.xlane.f32.xlu0 %v156
    %v158 = vpop.xlane.xlu0 %157
    %v159 = vsel %vm63, %v49, 0.0
    %160 = vadd.xlane.f32.xlu0 %v159
    %v161 = vpop.xlane.xlu0 %160
    %v162 = vsel %vm63, %v50, 0.0
    %163 = vadd.xlane.f32.xlu0 %v162
    %v164 = vpop.xlane.xlu0 %163
    %v165 = vsel %vm63, %v51, 0.0
    %166 = vadd.xlane.f32.xlu0 %v165
    %v167 = vpop.xlane.xlu0 %166
    %v168 = vsel %vm63, %v52, 0.0
    %169 = vadd.xlane.f32.xlu0 %v168
    %v170 = vpop.xlane.xlu0 %169
    %v171 = vsel %vm63, %v53, 0.0
    %172 = vadd.xlane.f32.xlu0 %v171
    %v173 = vpop.xlane.xlu0 %172
    %v174 = vsel %vm63, %v54, 0.0
    %175 = vadd.xlane.f32.xlu0 %v174
    %v176 = vpop.xlane.xlu0 %175
    %v177 = vadd.f32 %v145, %v155
    %v178 = vadd.f32 %v146, %v158
    %v179 = vadd.f32 %v147, %v161
    %v180 = vadd.f32 %v148, %v164
    %v181 = vadd.f32 %v149, %v167
    %v182 = vadd.f32 %v150, %v170
    %v183 = vadd.f32 %v151, %v173
    %v184 = vadd.f32 %v152, %v176
    %vm185 = vcmask 7168
    %186 = vst.msk [vmem:[#allocation3] sm:$0xff] %vm185, %v177
    %187 = vst.msk [vmem:[#allocation3 + $0x8] sm:$0xff] %vm185, %v178
    %188 = vst.msk [vmem:[#allocation3 + $0x10] sm:$0xff] %vm185, %v179
    %189 = vst.msk [vmem:[#allocation3 + $0x18] sm:$0xff] %vm185, %v180
    %190 = vst.msk [vmem:[#allocation3 + $0x20] sm:$0xff] %vm185, %v181
    %191 = vst.msk [vmem:[#allocation3 + $0x28] sm:$0xff] %vm185, %v182
    %192 = vst.msk [vmem:[#allocation3 + $0x30] sm:$0xff] %vm185, %v183
    %193 = vst.msk [vmem:[#allocation3 + $0x38] sm:$0xff] %vm185, %v184
    // Predicated region
    $region14: #{tpu_custom_call.1} parent=1 // pred_check
      %p194 = pneg %p25
    $region15: #{tpu_custom_call.1} parent=1 // pred_check_branch
      %196 = sbr.rel (%p194) target = $region17
    $region16: #{tpu_custom_call.1} parent=1 // pred_region
      %v197 = vlaneseq
      %v198 = vshrl.u32 %v197, 7
      %v199 = vadd.s32 %v198, 8
      %v200 = vlaneseq
      %v201 = vand.u32 %v200, 127
      %vm202 = vcmp.eq.s32.totalorder %v198, %v201
      %vm203 = vcmp.eq.s32.totalorder %v199, %v201
      %v204 = vld [vmem:[#allocation2] sm:$0xff]
      %v205 = vld [vmem:[#allocation2 + $0x8] sm:$0xff]
      %v206 = vld [vmem:[#allocation3] sm:$0xff]
      %v207 = vld [vmem:[#allocation3 + $0x8] sm:$0xff]
      %209 = vset.pattern.permute.xlu0 0
      %210 = vperm.xlu0 %209, %v206
      %v211 = vpop.permute.xlu0 %210
      %214 = vset.pattern.permute.xlu0 0
      %215 = vperm.xlu0 %214, %v207
      %v216 = vpop.permute.xlu0 %215
      %v218 = vsel %vm202, %v211, 0.0
      %v219 = vsel %vm203, %v216, 0.0
      %vm220 = vcmask 130048
      %v221 = vsel %vm220, %v218, 0.0
      %v222 = vsel %vm220, %v219, 0.0
      %v223 = vadd.f32 %v221, %v222
      %v224 = vrot.slane %v223, 4
      %v225 = vadd.f32 %v223, %v224
      %v226 = vrot.slane %v225, 2
      %v227 = vadd.f32 %v225, %v226
      %v228 = vrot.slane %v227, 1
      %v229 = vadd.f32 %v227, %v228
      %v230 = vmul.f32 %v204, 0.015873017
      %v231 = vmul.f32 %v205, 0.015873017
      %v232 = vmul.f32 %v211, %v229
      %v233 = vmul.f32 %v216, %v229
      %v234 = vmul.f32 %v232, 0.0002480159
      %v235 = vmul.f32 %v233, 0.0002480159
      %v236 = vsub.f32 %v230, %v234
      %v237 = vsub.f32 %v231, %v235
      %v238 = vsel %vm202, %v236, 0.0
      %v239 = vsel %vm203, %v237, 0.0
      %v240 = vsel %vm220, %v238, 0.0
      %v241 = vsel %vm220, %v239, 0.0
      %v242 = vadd.f32 %v240, %v241
      %243 = vadd.xlane.f32.xlu0 %v242
      %v244 = vpop.xlane.xlu0 %243
      %v245 = vrot.slane %v244, 4
      %v246 = vadd.f32 %v244, %v245
      %v247 = vrot.slane %v246, 2
      %v248 = vadd.f32 %v246, %v247
      %v249 = vrot.slane %v248, 1
      %v250 = vadd.f32 %v248, %v249
      %v251 = vmul.f32 %v250, 1e-06
      %v252 = vadd.f32 %v236, %v251
      %v253 = vadd.f32 %v237, %v251
      %v254 = vsel %vm202, %v252, %v236
      %v255 = vsel %vm203, %v253, %v237
      %256 = vst.msk [vmem:[#allocation7] sm:$0xff] %vm220, %v254
      %257 = vst.msk [vmem:[#allocation7 + $0x8] sm:$0xff] %vm220, %v255
      %v258 = vld [vmem:[#allocation2 + $0x10] sm:$0xff]
      %v259 = vld [vmem:[#allocation2 + $0x18] sm:$0xff]
      %v260 = vld [vmem:[#allocation3 + $0x10] sm:$0xff]
      %v261 = vld [vmem:[#allocation3 + $0x18] sm:$0xff]
      %263 = vset.pattern.permute.xlu0 0
      %264 = vperm.xlu0 %263, %v260
      %v265 = vpop.permute.xlu0 %264
      %268 = vset.pattern.permute.xlu0 0
      %269 = vperm.xlu0 %268, %v261
      %v270 = vpop.permute.xlu0 %269
      %v272 = vsel %vm202, %v265, 0.0
      %v273 = vsel %vm203, %v270, 0.0
      %v274 = vsel %vm220, %v272, 0.0
      %v275 = vsel %vm220, %v273, 0.0
      %v276 = vadd.f32 %v274, %v275
      %v277 = vrot.slane %v276, 4
      %v278 = vadd.f32 %v276, %v277
      %v279 = vrot.slane %v278, 2
      %v280 = vadd.f32 %v278, %v279
      %v281 = vrot.slane %v280, 1
      %v282 = vadd.f32 %v280, %v281
      %v283 = vmul.f32 %v258, 0.015873017
      %v284 = vmul.f32 %v259, 0.015873017
      %v285 = vmul.f32 %v265, %v282
      %v286 = vmul.f32 %v270, %v282
      %v287 = vmul.f32 %v285, 0.0002480159
      %v288 = vmul.f32 %v286, 0.0002480159
      %291 = vrot.lane.b32.xlu0 %v287, 16
      %v292 = vpop.permute.xlu0 %291
      %293 = vrot.lane.b32.xlu0 %v288, 16
      %v294 = vpop.permute.xlu0 %293
      %v297 = vsub.f32 %v283, %v292
      %v298 = vsub.f32 %v284, %v294
      %301 = vrot.lane.b32.xlu0 %v297, 112
      %v302 = vpop.permute.xlu0 %301
      %303 = vrot.lane.b32.xlu0 %v298, 112
      %v304 = vpop.permute.xlu0 %303
      %v307 = vsel %vm202, %v302, 0.0
      %v308 = vsel %vm203, %v304, 0.0
      %v309 = vsel %vm220, %v307, 0.0
      %v310 = vsel %vm220, %v308, 0.0
      %v311 = vadd.f32 %v309, %v310
      %312 = vadd.xlane.f32.xlu0 %v311
      %v313 = vpop.xlane.xlu0 %312
      %v314 = vrot.slane %v313, 4
      %v315 = vadd.f32 %v313, %v314
      %v316 = vrot.slane %v315, 2
      %v317 = vadd.f32 %v315, %v316
      %v318 = vrot.slane %v317, 1
      %v319 = vadd.f32 %v317, %v318
      %v320 = vmul.f32 %v319, 1e-06
      %v321 = vadd.f32 %v297, %v320
      %v322 = vadd.f32 %v298, %v320
      %325 = vrot.lane.b32.xlu0 %v321, 112
      %v326 = vpop.permute.xlu0 %325
      %327 = vrot.lane.b32.xlu0 %v322, 112
      %v328 = vpop.permute.xlu0 %327
      %v331 = vsel %vm202, %v326, %v302
      %v332 = vsel %vm203, %v328, %v304
      %s333 = scalar_lea.vmem [#allocation7], 16
      %334 = vst.msk [vmem:[%s333] sm:$0xff] %vm220, %v331
      %335 = vst.msk [vmem:[%s333 + $0x8] sm:$0xff] %vm220, %v332
      %v336 = vld [vmem:[#allocation2 + $0x20] sm:$0xff]
      %v337 = vld [vmem:[#allocation2 + $0x28] sm:$0xff]
      %v338 = vld [vmem:[#allocation3 + $0x20] sm:$0xff]
      %v339 = vld [vmem:[#allocation3 + $0x28] sm:$0xff]
      %341 = vset.pattern.permute.xlu0 0
      %342 = vperm.xlu0 %341, %v338
      %v343 = vpop.permute.xlu0 %342
      %346 = vset.pattern.permute.xlu0 0
      %347 = vperm.xlu0 %346, %v339
      %v348 = vpop.permute.xlu0 %347
      %v350 = vsel %vm202, %v343, 0.0
      %v351 = vsel %vm203, %v348, 0.0
      %v352 = vsel %vm220, %v350, 0.0
      %v353 = vsel %vm220, %v351, 0.0
      %v354 = vadd.f32 %v352, %v353
      %v355 = vrot.slane %v354, 4
      %v356 = vadd.f32 %v354, %v355
      %v357 = vrot.slane %v356, 2
      %v358 = vadd.f32 %v356, %v357
      %v359 = vrot.slane %v358, 1
      %v360 = vadd.f32 %v358, %v359
      %v361 = vmul.f32 %v336, 0.015873017
      %v362 = vmul.f32 %v337, 0.015873017
      %v363 = vmul.f32 %v343, %v360
      %v364 = vmul.f32 %v348, %v360
      %v365 = vmul.f32 %v363, 0.0002480159
      %v366 = vmul.f32 %v364, 0.0002480159
      %369 = vrot.lane.b32.xlu0 %v365, 32
      %v370 = vpop.permute.xlu0 %369
      %371 = vrot.lane.b32.xlu0 %v366, 32
      %v372 = vpop.permute.xlu0 %371
      %v375 = vsub.f32 %v361, %v370
      %v376 = vsub.f32 %v362, %v372
      %379 = vrot.lane.b32.xlu0 %v375, 96
      %v380 = vpop.permute.xlu0 %379
      %381 = vrot.lane.b32.xlu0 %v376, 96
      %v382 = vpop.permute.xlu0 %381
      %v385 = vsel %vm202, %v380, 0.0
      %v386 = vsel %vm203, %v382, 0.0
      %v387 = vsel %vm220, %v385, 0.0
      %v388 = vsel %vm220, %v386, 0.0
      %v389 = vadd.f32 %v387, %v388
      %390 = vadd.xlane.f32.xlu0 %v389
      %v391 = vpop.xlane.xlu0 %390
      %v392 = vrot.slane %v391, 4
      %v393 = vadd.f32 %v391, %v392
      %v394 = vrot.slane %v393, 2
      %v395 = vadd.f32 %v393, %v394
      %v396 = vrot.slane %v395, 1
      %v397 = vadd.f32 %v395, %v396
      %v398 = vmul.f32 %v397, 1e-06
      %v399 = vadd.f32 %v375, %v398
      %v400 = vadd.f32 %v376, %v398
      %403 = vrot.lane.b32.xlu0 %v399, 96
      %v404 = vpop.permute.xlu0 %403
      %405 = vrot.lane.b32.xlu0 %v400, 96
      %v406 = vpop.permute.xlu0 %405
      %v409 = vsel %vm202, %v404, %v380
      %v410 = vsel %vm203, %v406, %v382
      %s411 = scalar_lea.vmem [#allocation7], 32
      %412 = vst.msk [vmem:[%s411] sm:$0xff] %vm220, %v409
      %413 = vst.msk [vmem:[%s411 + $0x8] sm:$0xff] %vm220, %v410
      %v414 = vld [vmem:[#allocation2 + $0x30] sm:$0xff]
      %v415 = vld [vmem:[#allocation2 + $0x38] sm:$0xff]
      %v416 = vld [vmem:[#allocation3 + $0x30] sm:$0xff]
      %v417 = vld [vmem:[#allocation3 + $0x38] sm:$0xff]
      %419 = vset.pattern.permute.xlu0 0
      %420 = vperm.xlu0 %419, %v416
      %v421 = vpop.permute.xlu0 %420
      %424 = vset.pattern.permute.xlu0 0
      %425 = vperm.xlu0 %424, %v417
      %v426 = vpop.permute.xlu0 %425
      %v428 = vsel %vm202, %v421, 0.0
      %v429 = vsel %vm203, %v426, 0.0
      %v430 = vsel %vm220, %v428, 0.0
      %v431 = vsel %vm220, %v429, 0.0
      %v432 = vadd.f32 %v430, %v431
      %v433 = vrot.slane %v432, 4
      %v434 = vadd.f32 %v432, %v433
      %v435 = vrot.slane %v434, 2
      %v436 = vadd.f32 %v434, %v435
      %v437 = vrot.slane %v436, 1
      %v438 = vadd.f32 %v436, %v437
      %v439 = vmul.f32 %v414, 0.015873017
      %v440 = vmul.f32 %v415, 0.015873017
      %v441 = vmul.f32 %v421, %v438
      %v442 = vmul.f32 %v426, %v438
      %v443 = vmul.f32 %v441, 0.0002480159
      %v444 = vmul.f32 %v442, 0.0002480159
      %447 = vrot.lane.b32.xlu0 %v443, 48
      %v448 = vpop.permute.xlu0 %447
      %449 = vrot.lane.b32.xlu0 %v444, 48
      %v450 = vpop.permute.xlu0 %449
      %v453 = vsub.f32 %v439, %v448
      %v454 = vsub.f32 %v440, %v450
      %457 = vrot.lane.b32.xlu0 %v453, 80
      %v458 = vpop.permute.xlu0 %457
      %459 = vrot.lane.b32.xlu0 %v454, 80
      %v460 = vpop.permute.xlu0 %459
      %v463 = vsel %vm202, %v458, 0.0
      %v464 = vsel %vm203, %v460, 0.0
      %v465 = vsel %vm220, %v463, 0.0
      %v466 = vsel %vm220, %v464, 0.0
      %v467 = vadd.f32 %v465, %v466
      %468 = vadd.xlane.f32.xlu0 %v467
      %v469 = vpop.xlane.xlu0 %468
      %v470 = vrot.slane %v469, 4
      %v471 = vadd.f32 %v469, %v470
      %v472 = vrot.slane %v471, 2
      %v473 = vadd.f32 %v471, %v472
      %v474 = vrot.slane %v473, 1
      %v475 = vadd.f32 %v473, %v474
      %v476 = vmul.f32 %v475, 1e-06
      %v477 = vadd.f32 %v453, %v476
      %v478 = vadd.f32 %v454, %v476
      %481 = vrot.lane.b32.xlu0 %v477, 80
      %v482 = vpop.permute.xlu0 %481
      %483 = vrot.lane.b32.xlu0 %v478, 80
      %v484 = vpop.permute.xlu0 %483
      %v487 = vsel %vm202, %v482, %v458
      %v488 = vsel %vm203, %v484, %v460
      %s489 = scalar_lea.vmem [#allocation7], 48
      %490 = vst.msk [vmem:[%s489] sm:$0xff] %vm220, %v487
      %491 = vst.msk [vmem:[%s489 + $0x8] sm:$0xff] %vm220, %v488
    $region17: #{tpu_custom_call.1} parent=1 // pred_fallthru
      _
    // Predicated region
    $region18: #{tpu_custom_call.1} parent=1 // pred_check
      _
    $region19: #{tpu_custom_call.1} parent=1 // pred_check_branch
      %493 = sbr.rel (0) target = $region21
    $region20: #{tpu_custom_call.1} parent=1 // pred_region
      %495 = vsyncadd [#allocation6], 0
      %s496 = sshll.u32 [#allocation7], 4
      %s497 = int_to_ptr.vmem [resolvable:$true] %s496
      %s498 = sshll.u32 %s1, 4
      %s499 = int_to_ptr.hbm [resolvable:$true] %s498
      %504 = dma.vmem_to_hbm [thread:$0]  %s497, 1024, %s499, [#allocation6], 128, 128, 8
    $region21: #{tpu_custom_call.1} parent=1 // pred_fallthru
      _
    // Predicated region
    $region22: #{tpu_custom_call.1} parent=1 // pred_check
      _
    $region23: #{tpu_custom_call.1} parent=1 // pred_check_branch
      %506 = sbr.rel (0) target = $region25
    $region24: #{tpu_custom_call.1} parent=1 // pred_region
      %508 = dma.done [#allocation6], 1024
    $region25: #{tpu_custom_call.1} parent=1 // pred_fallthru
      _
    %509 = vsyncpa [#allocation5], 1
    %510 = vsyncpa [#allocation6], 1

</llo_original>
